<compile_context>
chip_gen: v7x
topology: tpu7x:2x2x1
jax: 0.10.0
libtpu: 0.0.40
codegen_flags: <defaults>
</compile_context>

<pallas_src>
import functools

import jax
import jax.numpy as jnp
from jax.experimental import pallas as pl
from jax.experimental.pallas import tpu as pltpu

_LANE = 128  # lane width / padded feature granularity


def _round_up(x, m):
    return (x + m - 1) // m * m


def _cdiv(a, b):
    return -(-a // b)


def _mlp_policy_kernel(n_layers, obs_ref, w_in_ref, w_hid_ref, w_out_ref,
                       b_hid_ref, b_out_ls_ref, noise_ref, out_ref):
    """One batch tile of the policy forward pass.

    obs_ref:      [TB, F_in]              bf16  (zero-padded features)
    w_in_ref:     [F_in, F_h]             bf16  (resident)
    w_hid_ref:    [max(n_layers-1,1), F_h, F_h] bf16 (resident; unused row if n_layers==1)
    w_out_ref:    [F_h, F_out]            bf16  (resident)
    b_hid_ref:    [n_layers, F_h]         f32   (resident hidden biases)
    b_out_ls_ref: [2, F_out]              f32   (row 0 = output bias, row 1 = logstd)
    noise_ref:    [TB, F_out]             f32   (standard-normal eps, zero-padded)
    out_ref:      [TB, F_out]             f32   (sampled action; padded cols are zero)
    """
    # First hidden layer: obs arrives bf16, MXU matmul with f32 accumulation.
    h = jnp.dot(obs_ref[...], w_in_ref[...], preferred_element_type=jnp.float32)
    x = jnp.tanh(h + b_hid_ref[0:1, :])

    # Remaining hidden layers (static Python unroll; biases read at point of use).
    for li in range(1, n_layers):
        h = jnp.dot(x.astype(jnp.bfloat16), w_hid_ref[li - 1],
                    preferred_element_type=jnp.float32)
        x = jnp.tanh(h + b_hid_ref[li:li + 1, :])

    # Output layer (no activation) -> mean.
    mean = jnp.dot(x.astype(jnp.bfloat16), w_out_ref[...],
                   preferred_element_type=jnp.float32) + b_out_ls_ref[0:1, :]

    # Normal(mean, exp(logstd)).rsample() == mean + exp(logstd) * eps.
    # Padded cols: mean=0, exp(0)=1, eps=0 -> output stays 0 there.
    std = jnp.exp(b_out_ls_ref[1:2, :])
    out_ref[...] = (mean + std * noise_ref[...]).astype(out_ref.dtype)


def pack_params(weights, biases, logstd):
    """Pack MLP parameters ONCE into lane-dense resident slabs (call outside the step)."""
    n_layers = len(weights) - 1
    assert n_layers >= 1, "expects at least one hidden layer"
    ob_dim, size = weights[0].shape
    ac_dim = weights[-1].shape[1]
    f_in = _round_up(ob_dim, _LANE)
    f_h = _round_up(size, _LANE)
    f_out = _round_up(ac_dim, _LANE)

    w_in = jnp.pad(weights[0].astype(jnp.bfloat16),
                   ((0, f_in - ob_dim), (0, f_h - size)))

    n_hid = max(n_layers - 1, 1)
    w_hid = jnp.zeros((n_hid, f_h, f_h), jnp.bfloat16)
    for li in range(1, n_layers):
        w_hid = w_hid.at[li - 1].set(
            jnp.pad(weights[li].astype(jnp.bfloat16),
                    ((0, f_h - size), (0, f_h - size))))

    w_out = jnp.pad(weights[-1].astype(jnp.bfloat16),
                    ((0, f_h - size), (0, f_out - ac_dim)))

    b_hid = jnp.zeros((n_layers, f_h), jnp.float32)
    for li in range(n_layers):
        b_hid = b_hid.at[li, :size].set(biases[li].astype(jnp.float32))

    b_out_ls = jnp.zeros((2, f_out), jnp.float32)
    b_out_ls = b_out_ls.at[0, :ac_dim].set(biases[-1].astype(jnp.float32))
    b_out_ls = b_out_ls.at[1, :ac_dim].set(logstd.astype(jnp.float32))

    return {"w_in": w_in, "w_hid": w_hid, "w_out": w_out,
            "b_hid": b_hid, "b_out_ls": b_out_ls}


def _vmem_need_bytes(tb, f_in, f_h, f_out, n_layers):
    """Double-buffered streamed tiles + double-buffered resident slabs."""
    n_hid = max(n_layers - 1, 1)
    stream = 2 * (tb * f_in * 2          # obs bf16
                  + tb * f_out * 4       # noise f32
                  + tb * f_out * 4)      # out f32
    resident = 2 * (f_in * f_h * 2
                    + n_hid * f_h * f_h * 2
                    + f_h * f_out * 2
                    + n_layers * f_h * 4
                    + 2 * f_out * 4)
    return stream + resident


@functools.partial(jax.jit, static_argnames=("n_layers", "block_b"))
def mlp_policy_forward(obs, noise, params, *, n_layers, block_b=1024):
    """Batch-tiled Pallas forward pass for MLPPolicySL.

    obs:    [B, ob_dim] float observations
    noise:  [B, ac_dim] standard-normal samples (rsample eps)
    params: output of pack_params()
    returns [B, ac_dim] sampled actions (float32)
    """
    B, ob_dim = obs.shape
    ac_dim = noise.shape[1]
    f_in, f_h = params["w_in"].shape
    f_out = params["w_out"].shape[1]
    n_hid = params["w_hid"].shape[0]

    # Adaptive batch tiling: pad batch only to a multiple of 16 (bf16 sublane
    # pack), aim for >= 2 tiles so both v7x TensorCores get work, cap tile size.
    b_pad = _round_up(B, 16)
    tb = min(block_b, max(16, _round_up(_cdiv(b_pad, 2), 16)))
    grid_b = _cdiv(b_pad, tb)

    # Single fused pad+cast per streamed tensor (no zeros + dynamic-update-slice).
    obs_p = jnp.pad(obs.astype(jnp.bfloat16),
                    ((0, b_pad - B), (0, f_in - ob_dim)))
    noise_p = jnp.pad(noise.astype(jnp.float32),
                      ((0, b_pad - B), (0, f_out - ac_dim)))

    need = _vmem_need_bytes(tb, f_in, f_h, f_out, n_layers)
    vmem_limit = max(32 << 20, min(2 * need + (4 << 20), 128 << 20))

    out_padded = pl.pallas_call(
        functools.partial(_mlp_policy_kernel, n_layers),
        out_shape=jax.ShapeDtypeStruct((b_pad, f_out), jnp.float32),
        grid=(grid_b,),
        in_specs=[
            pl.BlockSpec((tb, f_in), lambda i: (i, 0)),              # obs (streamed, bf16)
            pl.BlockSpec((f_in, f_h), lambda i: (0, 0)),             # w_in   (resident)
            pl.BlockSpec((n_hid, f_h, f_h), lambda i: (0, 0, 0)),    # w_hid  (resident)
            pl.BlockSpec((f_h, f_out), lambda i: (0, 0)),            # w_out  (resident)
            pl.BlockSpec((n_layers, f_h), lambda i: (0, 0)),         # hidden biases
            pl.BlockSpec((2, f_out), lambda i: (0, 0)),              # out bias + logstd
            pl.BlockSpec((tb, f_out), lambda i: (i, 0)),             # noise (streamed, f32)
        ],
        out_specs=pl.BlockSpec((tb, f_out), lambda i: (i, 0)),       # lane-dense output
        compiler_params=pltpu.CompilerParams(
            dimension_semantics=("parallel",),   # shard batch tiles across TCs (v7x)
            vmem_limit_bytes=vmem_limit,         # derived from actual footprint
        ),
    )(obs_p, params["w_in"], params["w_hid"], params["w_out"],
      params["b_hid"], params["b_out_ls"], noise_p)

    return out_padded[:B, :ac_dim]


def _init_linear(key, fan_in, fan_out):
    """Deterministic init mimicking torch.nn.Linear defaults: U(-1/sqrt(in), 1/sqrt(in))."""
    kw, kb = jax.random.split(key)
    bound = 1.0 / jnp.sqrt(jnp.float32(fan_in))
    w = jax.random.uniform(kw, (fan_in, fan_out), jnp.float32, -bound, bound)
    b = jax.random.uniform(kb, (fan_out,), jnp.float32, -bound, bound)
    return w, b


if __name__ == "__main__":
    # Small shapes consistent with MLPPolicySL(ac_dim, ob_dim, n_layers, size)
    B, ob_dim, ac_dim, n_layers, size = 8, 16, 8, 2, 32

    key = jax.random.PRNGKey(0)
    k_obs, k_noise, *k_layers = jax.random.split(key, 2 + n_layers + 1)

    # Parameters (deterministic, in-script)
    weights, biases = [], []
    in_size = ob_dim
    for li in range(n_layers):
        w, b = _init_linear(k_layers[li], in_size, size)
        weights.append(w)
        biases.append(b)
        in_size = size
    w_out, b_out = _init_linear(k_layers[-1], in_size, ac_dim)
    weights.append(w_out)
    biases.append(b_out)
    logstd = jnp.zeros((ac_dim,), jnp.float32)  # nn.Parameter(torch.zeros(ac_dim))

    # Inputs: observations and the standard-normal noise used by rsample()
    obs = jax.random.normal(k_obs, (B, ob_dim), jnp.float32)
    noise = jax.random.normal(k_noise, (B, ac_dim), jnp.float32)

    # Parameters packed once (outside the per-step forward).
    params = pack_params(weights, biases, logstd)

    action = mlp_policy_forward(obs, noise, params, n_layers=n_layers)
    jax.block_until_ready(action)

    # Reference #1: same arithmetic as the kernel (bf16 MXU operands, f32 accum).
    x = obs
    for w, b in zip(weights[:-1], biases[:-1]):
        x = jnp.tanh(jnp.dot(x.astype(jnp.bfloat16), w.astype(jnp.bfloat16),
                             preferred_element_type=jnp.float32) + b)
    mean_bf16 = jnp.dot(x.astype(jnp.bfloat16), weights[-1].astype(jnp.bfloat16),
                        preferred_element_type=jnp.float32) + biases[-1]
    ref_bf16 = mean_bf16 + jnp.exp(logstd)[None, :] * noise
    assert jnp.allclose(action, ref_bf16, atol=5e-3, rtol=5e-3), "mismatch vs bf16 reference"

    # Reference #2: pure-f32 original-module semantics (looser tolerance for bf16 matmul).
    x = obs
    for w, b in zip(weights[:-1], biases[:-1]):
        x = jnp.tanh(x @ w + b)
    mean_f32 = x @ weights[-1] + biases[-1]
    ref_f32 = mean_f32 + jnp.exp(logstd)[None, :] * noise
    assert jnp.allclose(action, ref_f32, atol=5e-2, rtol=5e-2), "mismatch vs f32 reference"

    print("KERNEL_OK")
</pallas_src>

<mosaic_0001>
module attributes {stable_mosaic.version = 11 : i64} {
  func.func @_mlp_policy_kernel(%arg0: i32, %arg1: memref<16x128xbf16, #tpu.memory_space<vmem>>, %arg2: memref<128x128xbf16, #tpu.memory_space<vmem>>, %arg3: memref<1x128x128xbf16, #tpu.memory_space<vmem>>, %arg4: memref<128x128xbf16, #tpu.memory_space<vmem>>, %arg5: memref<2x128xf32, #tpu.memory_space<vmem>>, %arg6: memref<2x128xf32, #tpu.memory_space<vmem>>, %arg7: memref<16x128xf32, #tpu.memory_space<vmem>>, %arg8: memref<16x128xf32, #tpu.memory_space<vmem>>) attributes {dimension_semantics = [#tpu.dimension_semantics<parallel>], iteration_bounds = array<i64: 1>, scalar_prefetch = 0 : i64, scratch_operands = 0 : i64, tpu.core_type = #tpu.core_type<tc>, window_params = [{transform_indices = @transform_0, window_bounds = array<i64: 16, 128>}, {pipeline_mode = #tpu.pipeline_mode<synchronous>, transform_indices = @transform_1, window_bounds = array<i64: 128, 128>}, {pipeline_mode = #tpu.pipeline_mode<synchronous>, transform_indices = @transform_2, window_bounds = array<i64: 1, 128, 128>}, {pipeline_mode = #tpu.pipeline_mode<synchronous>, transform_indices = @transform_3, window_bounds = array<i64: 128, 128>}, {pipeline_mode = #tpu.pipeline_mode<synchronous>, transform_indices = @transform_4, window_bounds = array<i64: 2, 128>}, {pipeline_mode = #tpu.pipeline_mode<synchronous>, transform_indices = @transform_5, window_bounds = array<i64: 2, 128>}, {transform_indices = @transform_6, window_bounds = array<i64: 16, 128>}, {transform_indices = @transform_7, window_bounds = array<i64: 16, 128>}]} {
    %c0 = arith.constant 0 : index
    %c0_0 = arith.constant 0 : index
    %0 = vector.load %arg1[%c0, %c0_0] : memref<16x128xbf16, #tpu.memory_space<vmem>>, vector<16x128xbf16>
    %c0_1 = arith.constant 0 : index
    %c0_2 = arith.constant 0 : index
    %1 = vector.load %arg2[%c0_1, %c0_2] : memref<128x128xbf16, #tpu.memory_space<vmem>>, vector<128x128xbf16>
    %cst = arith.constant dense<0.000000e+00> : vector<16x128xf32>
    %2 = tpu.matmul %0, %1, %cst {dimension_numbers = #tpu.dot_dimension_numbers<[1], [0], [0], [1], [0, 0, 1, 1], [], []>} : vector<16x128xbf16>, vector<128x128xbf16>, vector<16x128xf32> -> vector<16x128xf32>
    %c0_3 = arith.constant 0 : index
    %c0_4 = arith.constant 0 : index
    %3 = vector.load %arg5[%c0_3, %c0_4] : memref<2x128xf32, #tpu.memory_space<vmem>>, vector<1x128xf32>
    %4 = vector.broadcast %3 : vector<1x128xf32> to vector<16x128xf32>
    %5 = arith.addf %2, %4 : vector<16x128xf32>
    %6 = math.tanh %5 : vector<16x128xf32>
    %7 = arith.truncf %6 : vector<16x128xf32> to vector<16x128xbf16>
    %c0_5 = arith.constant 0 : index
    %c0_6 = arith.constant 0 : index
    %c0_7 = arith.constant 0 : index
    %8 = vector.load %arg3[%c0_5, %c0_6, %c0_7] : memref<1x128x128xbf16, #tpu.memory_space<vmem>>, vector<1x128x128xbf16>
    %9 = vector.shape_cast %8 : vector<1x128x128xbf16> to vector<128x128xbf16>
    %cst_8 = arith.constant dense<0.000000e+00> : vector<16x128xf32>
    %10 = tpu.matmul %7, %9, %cst_8 {dimension_numbers = #tpu.dot_dimension_numbers<[1], [0], [0], [1], [0, 0, 1, 1], [], []>} : vector<16x128xbf16>, vector<128x128xbf16>, vector<16x128xf32> -> vector<16x128xf32>
    %c1 = arith.constant 1 : index
    %c0_9 = arith.constant 0 : index
    %11 = vector.load %arg5[%c1, %c0_9] : memref<2x128xf32, #tpu.memory_space<vmem>>, vector<1x128xf32>
    %12 = vector.broadcast %11 : vector<1x128xf32> to vector<16x128xf32>
    %13 = arith.addf %10, %12 : vector<16x128xf32>
    %14 = math.tanh %13 : vector<16x128xf32>
    %15 = arith.truncf %14 : vector<16x128xf32> to vector<16x128xbf16>
    %c0_10 = arith.constant 0 : index
    %c0_11 = arith.constant 0 : index
    %16 = vector.load %arg4[%c0_10, %c0_11] : memref<128x128xbf16, #tpu.memory_space<vmem>>, vector<128x128xbf16>
    %cst_12 = arith.constant dense<0.000000e+00> : vector<16x128xf32>
    %17 = tpu.matmul %15, %16, %cst_12 {dimension_numbers = #tpu.dot_dimension_numbers<[1], [0], [0], [1], [0, 0, 1, 1], [], []>} : vector<16x128xbf16>, vector<128x128xbf16>, vector<16x128xf32> -> vector<16x128xf32>
    %c0_13 = arith.constant 0 : index
    %c0_14 = arith.constant 0 : index
    %18 = vector.load %arg6[%c0_13, %c0_14] : memref<2x128xf32, #tpu.memory_space<vmem>>, vector<1x128xf32>
    %19 = vector.broadcast %18 : vector<1x128xf32> to vector<16x128xf32>
    %20 = arith.addf %17, %19 : vector<16x128xf32>
    %c1_15 = arith.constant 1 : index
    %c0_16 = arith.constant 0 : index
    %21 = vector.load %arg6[%c1_15, %c0_16] : memref<2x128xf32, #tpu.memory_space<vmem>>, vector<1x128xf32>
    %22 = math.exp %21 : vector<1x128xf32>
    %c0_17 = arith.constant 0 : index
    %c0_18 = arith.constant 0 : index
    %23 = vector.load %arg7[%c0_17, %c0_18] : memref<16x128xf32, #tpu.memory_space<vmem>>, vector<16x128xf32>
    %24 = vector.broadcast %22 : vector<1x128xf32> to vector<16x128xf32>
    %25 = arith.mulf %24, %23 : vector<16x128xf32>
    %26 = arith.addf %20, %25 : vector<16x128xf32>
    %c0_19 = arith.constant 0 : index
    %c0_20 = arith.constant 0 : index
    %27 = vector.load %arg8[%c0_19, %c0_20] : memref<16x128xf32, #tpu.memory_space<vmem>>, vector<16x128xf32>
    tpu.vector_store %arg8[%c0_19, %c0_20], %26 {strides = array<i32>} : memref<16x128xf32, #tpu.memory_space<vmem>>, vector<16x128xf32>,
    return
  }
  func.func @transform_0(%arg0: i32) -> (i32, i32) {
    %c0_i32 = arith.constant 0 : i32
    %c0_i32_0 = arith.constant 0 : i32
    return %arg0, %c0_i32 : i32, i32
  }
  func.func @transform_1(%arg0: i32) -> (i32, i32) {
    %c0_i32 = arith.constant 0 : i32
    %c0_i32_0 = arith.constant 0 : i32
    %c0_i32_1 = arith.constant 0 : i32
    return %c0_i32, %c0_i32_0 : i32, i32
  }
  func.func @transform_2(%arg0: i32) -> (i32, i32, i32) {
    %c0_i32 = arith.constant 0 : i32
    %c0_i32_0 = arith.constant 0 : i32
    %c0_i32_1 = arith.constant 0 : i32
    %c0_i32_2 = arith.constant 0 : i32
    return %c0_i32, %c0_i32_0, %c0_i32_1 : i32, i32, i32
  }
  func.func @transform_3(%arg0: i32) -> (i32, i32) {
    %c0_i32 = arith.constant 0 : i32
    %c0_i32_0 = arith.constant 0 : i32
    %c0_i32_1 = arith.constant 0 : i32
    return %c0_i32, %c0_i32_0 : i32, i32
  }
  func.func @transform_4(%arg0: i32) -> (i32, i32) {
    %c0_i32 = arith.constant 0 : i32
    %c0_i32_0 = arith.constant 0 : i32
    %c0_i32_1 = arith.constant 0 : i32
    return %c0_i32, %c0_i32_0 : i32, i32
  }
  func.func @transform_5(%arg0: i32) -> (i32, i32) {
    %c0_i32 = arith.constant 0 : i32
    %c0_i32_0 = arith.constant 0 : i32
    %c0_i32_1 = arith.constant 0 : i32
    return %c0_i32, %c0_i32_0 : i32, i32
  }
  func.func @transform_6(%arg0: i32) -> (i32, i32) {
    %c0_i32 = arith.constant 0 : i32
    %c0_i32_0 = arith.constant 0 : i32
    return %arg0, %c0_i32 : i32, i32
  }
  func.func @transform_7(%arg0: i32) -> (i32, i32) {
    %c0_i32 = arith.constant 0 : i32
    %c0_i32_0 = arith.constant 0 : i32
    return %arg0, %c0_i32 : i32, i32
  }
}

</mosaic_0001>

<llo_original>
// kernel: mlp_policy_forward.1
$region0: #{mlp_policy_forward.1}
  #allocation0 [shape = 'u32[]', space=smem, size = 0x4, offset = 0x4, fixed_abs, tag = 'smem constant byte address 0x4 - core index']
  #allocation1 [shape = 'u32[144,128]{1,0:T(1,128)}', space=vmem, size = 0x12000, scoped, tag = 'internal scratch']
  %s0 = inlined_call_operand.vmem [shape: bf16[16,128], index: 0, kind: input, shape index: {}]
  %s1 = inlined_call_operand.vmem [shape: bf16[128,128], index: 1, kind: input, shape index: {}]
  %s2 = inlined_call_operand.hbm [shape: bf16[1,128,128], index: 2, kind: input, shape index: {}]
  %s3 = inlined_call_operand.hbm [shape: bf16[128,128], index: 3, kind: input, shape index: {}]
  %s4 = inlined_call_operand.vmem [shape: f32[2,128], index: 4, kind: input, shape index: {}]
  %s5 = inlined_call_operand.vmem [shape: f32[2,128], index: 5, kind: input, shape index: {}]
  %s6 = inlined_call_operand.vmem [shape: f32[16,128], index: 6, kind: input, shape index: {}]
  %s7 = inlined_call_operand.vmem [shape: f32[16,128], index: 7, kind: output, shape index: {}]
  %s8 = sld [smem:[#allocation0]]
  $region46: #{mlp_policy_forward.1} parent=0
    _
  %s10 = ssub.s32 1, %s8
  %s11 = scalar_select 0, %s10, %s8
  $region1: #{mlp_policy_forward.1} parent=0
    #allocation2 [shape = 'u8[32768]{0}', space=vmem, size = 0x8000, scoped, tag = 'input window, operand 2, single buffered']
    #allocation3 [shape = 's32[1]{0}', space=sflag, size = 0x4, scoped, tag = 'scoped memory for mlp_policy_forward.1']
    #allocation4 [shape = 'u8[32768]{0}', space=vmem, size = 0x8000, scoped, tag = 'input window, operand 3, single buffered']
    #allocation5 [shape = 's32[1]{0}', space=sflag, size = 0x4, scoped, tag = 'scoped memory for mlp_policy_forward.1']
    %12 = vsyncpa [#allocation3], 0
    %13 = vsyncpa [#allocation5], 0
    // Predicated region
    $region2: #{mlp_policy_forward.1} parent=1 // pred_check
      _
    $region3: #{mlp_policy_forward.1} parent=1 // pred_check_branch
      %15 = sbr.rel (0) target = $region5
    $region4: #{mlp_policy_forward.1} parent=1 // pred_region
      _
    $region5: #{mlp_policy_forward.1} parent=1 // pred_fallthru
      _
    // Predicated region
    $region6: #{mlp_policy_forward.1} parent=1 // pred_check
      _
    $region7: #{mlp_policy_forward.1} parent=1 // pred_check_branch
      %17 = sbr.rel (0) target = $region9
    $region8: #{mlp_policy_forward.1} parent=1 // pred_region
      _
    $region9: #{mlp_policy_forward.1} parent=1 // pred_fallthru
      _
    // Predicated region
    $region10: #{mlp_policy_forward.1} parent=1 // pred_check
      _
    $region11: #{mlp_policy_forward.1} parent=1 // pred_check_branch
      %19 = sbr.rel (0) target = $region13
    $region12: #{mlp_policy_forward.1} parent=1 // pred_region
      %s21 = ssub.s32 1024, 1024
      %22 = vsyncadd [#allocation3], %s21
      %s23 = sshll.u32 [#allocation2], 4
      %s24 = int_to_ptr.vmem [resolvable:$true] %s23
      %29 = dma.hbm_to_vmem [thread:$0]  %s2, 1024, %s24, [#allocation3], 64, 64, 4
    $region13: #{mlp_policy_forward.1} parent=1 // pred_fallthru
      _
    // Predicated region
    $region14: #{mlp_policy_forward.1} parent=1 // pred_check
      _
    $region15: #{mlp_policy_forward.1} parent=1 // pred_check_branch
      %31 = sbr.rel (0) target = $region17
    $region16: #{mlp_policy_forward.1} parent=1 // pred_region
      %s33 = ssub.s32 1024, 1024
      %34 = vsyncadd [#allocation5], %s33
      %s35 = sshll.u32 [#allocation4], 4
      %s36 = int_to_ptr.vmem [resolvable:$true] %s35
      %41 = dma.hbm_to_vmem [thread:$0]  %s3, 1024, %s36, [#allocation5], 64, 64, 4
    $region17: #{mlp_policy_forward.1} parent=1 // pred_fallthru
      _
    // Predicated region
    $region18: #{mlp_policy_forward.1} parent=1 // pred_check
      _
    $region19: #{mlp_policy_forward.1} parent=1 // pred_check_branch
      %43 = sbr.rel (0) target = $region21
    $region20: #{mlp_policy_forward.1} parent=1 // pred_region
      _
    $region21: #{mlp_policy_forward.1} parent=1 // pred_fallthru
      _
    // Predicated region
    $region22: #{mlp_policy_forward.1} parent=1 // pred_check
      _
    $region23: #{mlp_policy_forward.1} parent=1 // pred_check_branch
      %45 = sbr.rel (0) target = $region25
    $region24: #{mlp_policy_forward.1} parent=1 // pred_region
      _
    $region25: #{mlp_policy_forward.1} parent=1 // pred_fallthru
      _
    // Predicated region
    $region26: #{mlp_policy_forward.1} parent=1 // pred_check
      _
    $region27: #{mlp_policy_forward.1} parent=1 // pred_check_branch
      %47 = sbr.rel (0) target = $region29
    $region28: #{mlp_policy_forward.1} parent=1 // pred_region
      _
    $region29: #{mlp_policy_forward.1} parent=1 // pred_fallthru
      _
    // Predicated region
    $region30: #{mlp_policy_forward.1} parent=1 // pred_check
      _
    $region31: #{mlp_policy_forward.1} parent=1 // pred_check_branch
      %49 = sbr.rel (0) target = $region33
    $region32: #{mlp_policy_forward.1} parent=1 // pred_region
      %50 = dma.done [#allocation3], 1024
    $region33: #{mlp_policy_forward.1} parent=1 // pred_fallthru
      _
    // Predicated region
    $region34: #{mlp_policy_forward.1} parent=1 // pred_check
      _
    $region35: #{mlp_policy_forward.1} parent=1 // pred_check_branch
      %52 = sbr.rel (0) target = $region37
    $region36: #{mlp_policy_forward.1} parent=1 // pred_region
      %53 = dma.done [#allocation5], 1024
    $region37: #{mlp_policy_forward.1} parent=1 // pred_fallthru
      _
    %v55 = vld [vmem:[%s0] sm:$0xf]
    %v56 = vld [vmem:[%s0 + $0x4] sm:$0xf]
    %v57 = vld [vmem:[%s1] sm:$0xf]
    %v58 = vld [vmem:[%s1 + $0x4] sm:$0xf]
    %v59 = vld [vmem:[%s1 + $0x8] sm:$0xf]
    %v60 = vld [vmem:[%s1 + $0xc] sm:$0xf]
    %v61 = vld [vmem:[%s1 + $0x10] sm:$0xf]
    %v62 = vld [vmem:[%s1 + $0x14] sm:$0xf]
    %v63 = vld [vmem:[%s1 + $0x18] sm:$0xf]
    %v64 = vld [vmem:[%s1 + $0x1c] sm:$0xf]
    %v65 = vld [vmem:[%s1 + $0x20] sm:$0xf]
    %v66 = vld [vmem:[%s1 + $0x24] sm:$0xf]
    %v67 = vld [vmem:[%s1 + $0x28] sm:$0xf]
    %v68 = vld [vmem:[%s1 + $0x2c] sm:$0xf]
    %v69 = vld [vmem:[%s1 + $0x30] sm:$0xf]
    %v70 = vld [vmem:[%s1 + $0x34] sm:$0xf]
    %v71 = vld [vmem:[%s1 + $0x38] sm:$0xf]
    %v72 = vld [vmem:[%s1 + $0x3c] sm:$0xf]
    %v73 = vld [vmem:[%s4] sm:$0x1]
    %v74 = vlaneseq
    %v75 = vshrl.u32 %v74, 7
    %v76 = vsub.s32 0, %v75
    %v77 = vrot.slane %v73, %v76
    %v80 = vunpack.c.l.b16 %v55
    %v81 = vunpack.c.l.b16 %v56
    %v82 = vpack.c.b16 %v81, %v80
    %v100 = vunpack.c.l.b16 %v57
    %v101 = vunpack.c.l.b16 %v58
    %v102 = vunpack.c.l.b16 %v59
    %v103 = vunpack.c.l.b16 %v60
    %v104 = vunpack.c.l.b16 %v61
    %v105 = vunpack.c.l.b16 %v62
    %v106 = vunpack.c.l.b16 %v63
    %v107 = vunpack.c.l.b16 %v64
    %v108 = vunpack.c.l.b16 %v65
    %v109 = vunpack.c.l.b16 %v66
    %v110 = vunpack.c.l.b16 %v67
    %v111 = vunpack.c.l.b16 %v68
    %v112 = vunpack.c.l.b16 %v69
    %v113 = vunpack.c.l.b16 %v70
    %v114 = vunpack.c.l.b16 %v71
    %v115 = vunpack.c.l.b16 %v72
    %v116 = vpack.c.b16 %v101, %v100
    %v117 = vpack.c.b16 %v103, %v102
    %v118 = vpack.c.b16 %v105, %v104
    %v119 = vpack.c.b16 %v107, %v106
    %v120 = vpack.c.b16 %v109, %v108
    %v121 = vpack.c.b16 %v111, %v110
    %v122 = vpack.c.b16 %v113, %v112
    %v123 = vpack.c.b16 %v115, %v114
    %132 = vmatprep.subr.bf16.mxu0 0
    %133 = vmatpush1.bf16.msra.mxu0 %v116
    %134 = vmatprep.subr.bf16.mxu0 0
    %135 = vmatpush1.bf16.msra.mxu0 %v117
    %136 = vmatprep.subr.bf16.mxu0 0
    %137 = vmatpush1.bf16.msra.mxu0 %v118
    %138 = vmatprep.subr.bf16.mxu0 0
    %139 = vmatpush1.bf16.msra.mxu0 %v119
    %140 = vmatprep.subr.bf16.mxu0 0
    %141 = vmatpush1.bf16.msra.mxu0 %v120
    %142 = vmatprep.subr.bf16.mxu0 0
    %143 = vmatpush1.bf16.msra.mxu0 %v121
    %144 = vmatprep.subr.bf16.mxu0 0
    %145 = vmatpush1.bf16.msra.mxu0 %v122
    %146 = vmatprep.subr.bf16.mxu0 0
    %147 = vmatpush1.bf16.msra.mxu0 %v123
    %148 = vmatprep.subr.bf16.mxu0 0
    %149 = vmatpush1.bf16.msra.mxu0 0
    %150 = vmatprep.subr.bf16.mxu0 0
    %151 = vmatpush1.bf16.msra.mxu0 0
    %152 = vmatprep.subr.bf16.mxu0 0
    %153 = vmatpush1.bf16.msra.mxu0 0
    %154 = vmatprep.subr.bf16.mxu0 0
    %155 = vmatpush1.bf16.msra.mxu0 0
    %156 = vmatprep.subr.bf16.mxu0 0
    %157 = vmatpush1.bf16.msra.mxu0 0
    %158 = vmatprep.subr.bf16.mxu0 0
    %159 = vmatpush1.bf16.msra.mxu0 0
    %160 = vmatprep.subr.bf16.mxu0 0
    %161 = vmatpush1.bf16.msra.mxu0 0
    %162 = vmatprep.subr.bf16.mxu0 0
    %163 = vmatpush1.bf16.msra.mxu0 0
    %164 = vmatprep.mubr.bf16.mxu0 0
    %165 = vmatmul.mubr.bf16.gmra.mrb[0].mxu0 %v82
    %v166 = vpop.f32.mrb[0].mxu0
    %v167 = vadd.f32 %v77, %v166
    %v168 = vpop.f32.mrb[0].mxu0
    %v169 = vpop.f32.mrb[0].mxu0
    %v170 = vadd.f32 %v77, %v169
    %v171 = vpop.f32.mrb[0].mxu0
    %172 = vdwg.mxu0
    %v173 = vtanh.pop %v167
    %v174 = vtanh.pop %v170
    %v175 = vpack.c.bf16 %v174, %v173
    %v176 = vld [vmem:[#allocation2] sm:$0xf]
    %v177 = vld [vmem:[#allocation2 + $0x4] sm:$0xf]
    %v178 = vld [vmem:[#allocation2 + $0x8] sm:$0xf]
    %v179 = vld [vmem:[#allocation2 + $0xc] sm:$0xf]
    %v180 = vld [vmem:[#allocation2 + $0x10] sm:$0xf]
    %v181 = vld [vmem:[#allocation2 + $0x14] sm:$0xf]
    %v182 = vld [vmem:[#allocation2 + $0x18] sm:$0xf]
    %v183 = vld [vmem:[#allocation2 + $0x1c] sm:$0xf]
    %v184 = vld [vmem:[#allocation2 + $0x20] sm:$0xf]
    %v185 = vld [vmem:[#allocation2 + $0x24] sm:$0xf]
    %v186 = vld [vmem:[#allocation2 + $0x28] sm:$0xf]
    %v187 = vld [vmem:[#allocation2 + $0x2c] sm:$0xf]
    %v188 = vld [vmem:[#allocation2 + $0x30] sm:$0xf]
    %v189 = vld [vmem:[#allocation2 + $0x34] sm:$0xf]
    %v190 = vld [vmem:[#allocation2 + $0x38] sm:$0xf]
    %v191 = vld [vmem:[#allocation2 + $0x3c] sm:$0xf]
    %v192 = vld [vmem:[%s4 + $0x1] sm:$0x1]
    %v193 = vlaneseq
    %v194 = vshrl.u32 %v193, 7
    %v195 = vsub.s32 0, %v194
    %v196 = vrot.slane %v192, %v195
    %v213 = vunpack.c.l.b16 %v176
    %v214 = vunpack.c.l.b16 %v177
    %v215 = vunpack.c.l.b16 %v178
    %v216 = vunpack.c.l.b16 %v179
    %v217 = vunpack.c.l.b16 %v180
    %v218 = vunpack.c.l.b16 %v181
    %v219 = vunpack.c.l.b16 %v182
    %v220 = vunpack.c.l.b16 %v183
    %v221 = vunpack.c.l.b16 %v184
    %v222 = vunpack.c.l.b16 %v185
    %v223 = vunpack.c.l.b16 %v186
    %v224 = vunpack.c.l.b16 %v187
    %v225 = vunpack.c.l.b16 %v188
    %v226 = vunpack.c.l.b16 %v189
    %v227 = vunpack.c.l.b16 %v190
    %v228 = vunpack.c.l.b16 %v191
    %v229 = vpack.c.b16 %v214, %v213
    %v230 = vpack.c.b16 %v216, %v215
    %v231 = vpack.c.b16 %v218, %v217
    %v232 = vpack.c.b16 %v220, %v219
    %v233 = vpack.c.b16 %v222, %v221
    %v234 = vpack.c.b16 %v224, %v223
    %v235 = vpack.c.b16 %v226, %v225
    %v236 = vpack.c.b16 %v228, %v227
    %245 = vmatprep.subr.bf16.mxu0 0
    %246 = vmatpush1.bf16.msra.mxu0 %v229
    %247 = vmatprep.subr.bf16.mxu0 0
    %248 = vmatpush1.bf16.msra.mxu0 %v230
    %249 = vmatprep.subr.bf16.mxu0 0
    %250 = vmatpush1.bf16.msra.mxu0 %v231
    %251 = vmatprep.subr.bf16.mxu0 0
    %252 = vmatpush1.bf16.msra.mxu0 %v232
    %253 = vmatprep.subr.bf16.mxu0 0
    %254 = vmatpush1.bf16.msra.mxu0 %v233
    %255 = vmatprep.subr.bf16.mxu0 0
    %256 = vmatpush1.bf16.msra.mxu0 %v234
    %257 = vmatprep.subr.bf16.mxu0 0
    %258 = vmatpush1.bf16.msra.mxu0 %v235
    %259 = vmatprep.subr.bf16.mxu0 0
    %260 = vmatpush1.bf16.msra.mxu0 %v236
    %261 = vmatprep.subr.bf16.mxu0 0
    %262 = vmatpush1.bf16.msra.mxu0 0
    %263 = vmatprep.subr.bf16.mxu0 0
    %264 = vmatpush1.bf16.msra.mxu0 0
    %265 = vmatprep.subr.bf16.mxu0 0
    %266 = vmatpush1.bf16.msra.mxu0 0
    %267 = vmatprep.subr.bf16.mxu0 0
    %268 = vmatpush1.bf16.msra.mxu0 0
    %269 = vmatprep.subr.bf16.mxu0 0
    %270 = vmatpush1.bf16.msra.mxu0 0
    %271 = vmatprep.subr.bf16.mxu0 0
    %272 = vmatpush1.bf16.msra.mxu0 0
    %273 = vmatprep.subr.bf16.mxu0 0
    %274 = vmatpush1.bf16.msra.mxu0 0
    %275 = vmatprep.subr.bf16.mxu0 0
    %276 = vmatpush1.bf16.msra.mxu0 0
    %277 = vmatprep.mubr.bf16.mxu0 0
    %278 = vmatmul.mubr.bf16.gmra.mrb[0].mxu0 %v175
    %v279 = vpop.f32.mrb[0].mxu0
    %v280 = vadd.f32 %v196, %v279
    %v281 = vpop.f32.mrb[0].mxu0
    %v282 = vpop.f32.mrb[0].mxu0
    %v283 = vadd.f32 %v196, %v282
    %v284 = vpop.f32.mrb[0].mxu0
    %285 = vdwg.mxu0
    %v286 = vtanh.pop %v280
    %v287 = vtanh.pop %v283
    %v288 = vpack.c.bf16 %v287, %v286
    %v289 = vld [vmem:[#allocation4] sm:$0xf]
    %v290 = vld [vmem:[#allocation4 + $0x4] sm:$0xf]
    %v291 = vld [vmem:[#allocation4 + $0x8] sm:$0xf]
    %v292 = vld [vmem:[#allocation4 + $0xc] sm:$0xf]
    %v293 = vld [vmem:[#allocation4 + $0x10] sm:$0xf]
    %v294 = vld [vmem:[#allocation4 + $0x14] sm:$0xf]
    %v295 = vld [vmem:[#allocation4 + $0x18] sm:$0xf]
    %v296 = vld [vmem:[#allocation4 + $0x1c] sm:$0xf]
    %v297 = vld [vmem:[#allocation4 + $0x20] sm:$0xf]
    %v298 = vld [vmem:[#allocation4 + $0x24] sm:$0xf]
    %v299 = vld [vmem:[#allocation4 + $0x28] sm:$0xf]
    %v300 = vld [vmem:[#allocation4 + $0x2c] sm:$0xf]
    %v301 = vld [vmem:[#allocation4 + $0x30] sm:$0xf]
    %v302 = vld [vmem:[#allocation4 + $0x34] sm:$0xf]
    %v303 = vld [vmem:[#allocation4 + $0x38] sm:$0xf]
    %v304 = vld [vmem:[#allocation4 + $0x3c] sm:$0xf]
    %v305 = vld [vmem:[%s5] sm:$0x1]
    %v306 = vlaneseq
    %v307 = vshrl.u32 %v306, 7
    %v308 = vsub.s32 0, %v307
    %v309 = vrot.slane %v305, %v308
    %v326 = vunpack.c.l.b16 %v289
    %v327 = vunpack.c.l.b16 %v290
    %v328 = vunpack.c.l.b16 %v291
    %v329 = vunpack.c.l.b16 %v292
    %v330 = vunpack.c.l.b16 %v293
    %v331 = vunpack.c.l.b16 %v294
    %v332 = vunpack.c.l.b16 %v295
    %v333 = vunpack.c.l.b16 %v296
    %v334 = vunpack.c.l.b16 %v297
    %v335 = vunpack.c.l.b16 %v298
    %v336 = vunpack.c.l.b16 %v299
    %v337 = vunpack.c.l.b16 %v300
    %v338 = vunpack.c.l.b16 %v301
    %v339 = vunpack.c.l.b16 %v302
    %v340 = vunpack.c.l.b16 %v303
    %v341 = vunpack.c.l.b16 %v304
    %v342 = vpack.c.b16 %v327, %v326
    %v343 = vpack.c.b16 %v329, %v328
    %v344 = vpack.c.b16 %v331, %v330
    %v345 = vpack.c.b16 %v333, %v332
    %v346 = vpack.c.b16 %v335, %v334
    %v347 = vpack.c.b16 %v337, %v336
    %v348 = vpack.c.b16 %v339, %v338
    %v349 = vpack.c.b16 %v341, %v340
    %358 = vmatprep.subr.bf16.mxu0 0
    %359 = vmatpush1.bf16.msra.mxu0 %v342
    %360 = vmatprep.subr.bf16.mxu0 0
    %361 = vmatpush1.bf16.msra.mxu0 %v343
    %362 = vmatprep.subr.bf16.mxu0 0
    %363 = vmatpush1.bf16.msra.mxu0 %v344
    %364 = vmatprep.subr.bf16.mxu0 0
    %365 = vmatpush1.bf16.msra.mxu0 %v345
    %366 = vmatprep.subr.bf16.mxu0 0
    %367 = vmatpush1.bf16.msra.mxu0 %v346
    %368 = vmatprep.subr.bf16.mxu0 0
    %369 = vmatpush1.bf16.msra.mxu0 %v347
    %370 = vmatprep.subr.bf16.mxu0 0
    %371 = vmatpush1.bf16.msra.mxu0 %v348
    %372 = vmatprep.subr.bf16.mxu0 0
    %373 = vmatpush1.bf16.msra.mxu0 %v349
    %374 = vmatprep.subr.bf16.mxu0 0
    %375 = vmatpush1.bf16.msra.mxu0 0
    %376 = vmatprep.subr.bf16.mxu0 0
    %377 = vmatpush1.bf16.msra.mxu0 0
    %378 = vmatprep.subr.bf16.mxu0 0
    %379 = vmatpush1.bf16.msra.mxu0 0
    %380 = vmatprep.subr.bf16.mxu0 0
    %381 = vmatpush1.bf16.msra.mxu0 0
    %382 = vmatprep.subr.bf16.mxu0 0
    %383 = vmatpush1.bf16.msra.mxu0 0
    %384 = vmatprep.subr.bf16.mxu0 0
    %385 = vmatpush1.bf16.msra.mxu0 0
    %386 = vmatprep.subr.bf16.mxu0 0
    %387 = vmatpush1.bf16.msra.mxu0 0
    %388 = vmatprep.subr.bf16.mxu0 0
    %389 = vmatpush1.bf16.msra.mxu0 0
    %390 = vmatprep.mubr.bf16.mxu0 0
    %391 = vmatmul.mubr.bf16.gmra.mrb[0].mxu0 %v288
    %v392 = vpop.f32.mrb[0].mxu0
    %v393 = vadd.f32 %v309, %v392
    %v394 = vpop.f32.mrb[0].mxu0
    %v395 = vpop.f32.mrb[0].mxu0
    %v396 = vadd.f32 %v309, %v395
    %v397 = vpop.f32.mrb[0].mxu0
    %398 = vdwg.mxu0
    %v399 = vld [vmem:[%s5 + $0x1] sm:$0x1]
    %v400 = vmul.f32 %v399, 1.442695
    %v401 = vpow.pop %v400
    %v402 = vld [vmem:[%s6] sm:$0xff]
    %v403 = vld [vmem:[%s6 + $0x8] sm:$0xff]
    %v404 = vlaneseq
    %v405 = vshrl.u32 %v404, 7
    %v406 = vsub.s32 0, %v405
    %v407 = vrot.slane %v401, %v406
    %v408 = vmul.f32 %v407, %v402
    %v409 = vmul.f32 %v407, %v403
    %v410 = vadd.f32 %v393, %v408
    %v411 = vadd.f32 %v396, %v409
    %412 = vst [vmem:[%s7] sm:$0xff] %v410
    %413 = vst [vmem:[%s7 + $0x8] sm:$0xff] %v411
    // Predicated region
    $region38: #{mlp_policy_forward.1} parent=1 // pred_check
      _
    $region39: #{mlp_policy_forward.1} parent=1 // pred_check_branch
      %415 = sbr.rel (0) target = $region41
    $region40: #{mlp_policy_forward.1} parent=1 // pred_region
      _
    $region41: #{mlp_policy_forward.1} parent=1 // pred_fallthru
      _
    // Predicated region
    $region42: #{mlp_policy_forward.1} parent=1 // pred_check
      _
    $region43: #{mlp_policy_forward.1} parent=1 // pred_check_branch
      %417 = sbr.rel (0) target = $region45
    $region44: #{mlp_policy_forward.1} parent=1 // pred_region
      _
    $region45: #{mlp_policy_forward.1} parent=1 // pred_fallthru
      _
    %418 = vsyncpa [#allocation3], 1
    %419 = vsyncpa [#allocation5], 1

</llo_original>
